<compile_context>
chip_gen: v6e
topology: v6e:2x2x1
jax: 0.10.0
libtpu: 0.0.40
codegen_flags: <defaults>
</compile_context>

<pallas_src>
import jax
import jax.numpy as jnp
from jax import lax
from jax.experimental import pallas as pl
from jax.experimental.pallas import tpu as pltpu

_LANES = 512          # lane-dense width (multiple of 128)
_MAX_TILE_ROWS = 1024  # 1024 x 512 f32 = 2 MiB per tile (v5e/v6e/v7x safe)


def _dummy_actor_kernel(bits_ref, out_ref):
    # bits_ref: (TM, _LANES) uint32 random words; out_ref: (TM, _LANES) f32.
    bits = bits_ref[...]
    # Keep 23 random mantissa bits, force the exponent so the float lies in
    # [2, 4), then subtract 3.0 -> uniform in [-1, 1).  (Fused 2*u - 1.)
    mant = jnp.bitwise_and(bits, jnp.uint32(0x007FFFFF))
    two_four = jnp.bitwise_or(mant, jnp.uint32(0x40000000))
    f = lax.bitcast_convert_type(two_four, jnp.float32)
    out_ref[...] = f - jnp.float32(3.0)


def dummy_actor_forward(s, action_dim, key):
    """Pallas equivalent of DummyActor.forward(s).

    `s` is only consulted for its batch dimension; its data never reaches the
    kernel (matching the PyTorch module, which ignores the state entirely).
    `key` plays the role of numpy's global RNG state — vary it per call.
    """
    batch = s.shape[0]
    total = batch * action_dim

    # Lane-dense padded layout: (rows, _LANES) with rows a multiple of 8.
    rows = pl.cdiv(total, _LANES)
    rows = max(((rows + 7) // 8) * 8, 8)
    tm = min(rows, _MAX_TILE_ROWS)
    grid = (pl.cdiv(rows, tm),)

    # TODO(synk): on a TPU-only deployment the random words could be generated
    # in-kernel with pltpu.prng_seed / pltpu.prng_random_bits (one less HBM
    # read); drawn wrapper-side here because those primitives have no
    # CPU/interpret lowering.
    bits = jax.random.bits(key, (rows, _LANES), dtype=jnp.uint32)

    out2d = pl.pallas_call(
        _dummy_actor_kernel,
        out_shape=jax.ShapeDtypeStruct((rows, _LANES), jnp.float32),
        grid=grid,
        in_specs=[pl.BlockSpec((tm, _LANES), lambda i: (i, 0))],
        out_specs=pl.BlockSpec((tm, _LANES), lambda i: (i, 0)),
        compiler_params=pltpu.CompilerParams(
            dimension_semantics=("parallel",)),
    )(bits)

    # Free metadata reshape/slice back to (batch, action_dim).
    return out2d.reshape(-1)[:total].reshape(batch, action_dim)


if __name__ == "__main__":
    key = jax.random.PRNGKey(0)
    k_state, k_act = jax.random.split(key)

    # Small shapes consistent with the module: batch=2, state_dim=16, a_dim=8.
    batch, state_dim, a_dim = 2, 16, 8
    s = jax.random.normal(k_state, (batch, state_dim), dtype=jnp.float32)

    act = dummy_actor_forward(s, a_dim, k_act)
    act = jax.block_until_ready(act)

    assert act.shape == (batch, a_dim), act.shape
    assert act.dtype == jnp.float32, act.dtype
    # Values must lie in [-1, 1) like 2*rand - 1.
    assert bool(jnp.all(act >= -1.0)) and bool(jnp.all(act < 1.0)), act

    print("KERNEL_OK")
</pallas_src>

<mosaic_0001>
module attributes {stable_mosaic.version = 11 : i64} {
  func.func @_dummy_actor_kernel(%arg0: i32, %arg1: memref<8x512xi32, #tpu.memory_space<vmem>>, %arg2: memref<8x512xf32, #tpu.memory_space<vmem>>) attributes {dimension_semantics = [#tpu.dimension_semantics<parallel>], iteration_bounds = array<i64: 1>, scalar_prefetch = 0 : i64, scratch_operands = 0 : i64, tpu.core_type = #tpu.core_type<tc>, window_params = [{transform_indices = @transform_0, window_bounds = array<i64: 8, 512>}, {transform_indices = @transform_1, window_bounds = array<i64: 8, 512>}]} {
    %c0 = arith.constant 0 : index
    %c0_0 = arith.constant 0 : index
    %0 = vector.load %arg1[%c0, %c0_0] : memref<8x512xi32, #tpu.memory_space<vmem>>, vector<8x512xi32>
    %c8388607_i32 = arith.constant 8388607 : i32
    %1 = vector.broadcast %c8388607_i32 : i32 to vector<8x512xi32>
    %2 = arith.andi %0, %1 : vector<8x512xi32>
    %c1073741824_i32 = arith.constant 1073741824 : i32
    %3 = vector.broadcast %c1073741824_i32 : i32 to vector<8x512xi32>
    %4 = arith.ori %2, %3 : vector<8x512xi32>
    %5 = tpu.bitcast %4 : vector<8x512xi32> -> vector<8x512xf32>
    %cst = arith.constant 3.000000e+00 : f32
    %6 = vector.broadcast %cst : f32 to vector<8x512xf32>
    %7 = arith.subf %5, %6 : vector<8x512xf32>
    %c0_1 = arith.constant 0 : index
    %c0_2 = arith.constant 0 : index
    %8 = vector.load %arg2[%c0_1, %c0_2] : memref<8x512xf32, #tpu.memory_space<vmem>>, vector<8x512xf32>
    tpu.vector_store %arg2[%c0_1, %c0_2], %7 {strides = array<i32>} : memref<8x512xf32, #tpu.memory_space<vmem>>, vector<8x512xf32>,
    return
  }
  func.func @transform_0(%arg0: i32) -> (i32, i32) {
    %c0_i32 = arith.constant 0 : i32
    %c0_i32_0 = arith.constant 0 : i32
    return %arg0, %c0_i32 : i32, i32
  }
  func.func @transform_1(%arg0: i32) -> (i32, i32) {
    %c0_i32 = arith.constant 0 : i32
    %c0_i32_0 = arith.constant 0 : i32
    return %arg0, %c0_i32 : i32, i32
  }
}

</mosaic_0001>

<llo_original>
// kernel: tpu_custom_call.1
$region0: #{tpu_custom_call.1}
  #allocation0 [shape = 'u32[]', space=smem, size = 0x4, offset = 0x4, fixed_abs, tag = 'smem constant byte address 0x4 - core index']
  #allocation1 [shape = 'u32[144,128]{1,0:T(1,128)}', space=vmem, size = 0x12000, scoped, tag = 'internal scratch']
  %s0 = inlined_call_operand.hbm [shape: u32[8,512], index: 0, kind: input, shape index: {}]
  %s1 = inlined_call_operand.hbm [shape: f32[8,512], index: 1, kind: output, shape index: {}]
  %s2 = sld [smem:[#allocation0]]
  $region18: #{tpu_custom_call.1} parent=0
    _
  %s4 = ssub.s32 1, %s2
  %s5 = scalar_select 0, %s4, %s2
  $region1: #{tpu_custom_call.1} parent=0
    #allocation2 [shape = 'u8[16384]{0}', space=vmem, size = 0x4000, scoped, tag = 'input window, operand 0, single buffered']
    #allocation3 [shape = 's32[1]{0}', space=sflag, size = 0x4, scoped, tag = 'scoped memory for tpu_custom_call.1']
    #allocation4 [shape = 's32[1]{0}', space=sflag, size = 0x4, scoped, tag = 'scoped memory for tpu_custom_call.1']
    #allocation5 [shape = 'u8[16384]{0}', space=vmem, size = 0x4000, scoped, tag = 'output window, operand 0, single buffered']
    %6 = vsyncpa [#allocation3], 0
    %7 = vsyncpa [#allocation4], 0
    // Predicated region
    $region2: #{tpu_custom_call.1} parent=1 // pred_check
      _
    $region3: #{tpu_custom_call.1} parent=1 // pred_check_branch
      %9 = sbr.rel (0) target = $region5
    $region4: #{tpu_custom_call.1} parent=1 // pred_region
      %s11 = ssub.s32 512, 512
      %12 = vsyncadd [#allocation3], %s11
      %s14 = sshll.u32 [#allocation2], 4
      %s15 = int_to_ptr.vmem [resolvable:$true] %s14
      %17 = dma.hbm_to_vmem [thread:$0]  %s0, 512, %s15, [#allocation3]
    $region5: #{tpu_custom_call.1} parent=1 // pred_fallthru
      _
    // Predicated region
    $region6: #{tpu_custom_call.1} parent=1 // pred_check
      _
    $region7: #{tpu_custom_call.1} parent=1 // pred_check_branch
      %19 = sbr.rel (0) target = $region9
    $region8: #{tpu_custom_call.1} parent=1 // pred_region
      %20 = dma.done [#allocation3], 512
    $region9: #{tpu_custom_call.1} parent=1 // pred_fallthru
      _
    %v21 = vld [vmem:[#allocation2] sm:$0xff]
    %v22 = vld [vmem:[#allocation2 + $0x8] sm:$0xff]
    %v23 = vld [vmem:[#allocation2 + $0x10] sm:$0xff]
    %v24 = vld [vmem:[#allocation2 + $0x18] sm:$0xff]
    %v25 = vand.u32 %v21, 8388607
    %v26 = vand.u32 %v22, 8388607
    %v27 = vand.u32 %v23, 8388607
    %v28 = vand.u32 %v24, 8388607
    %v29 = vor.u32 %v25, 1073741824
    %v30 = vor.u32 %v26, 1073741824
    %v31 = vor.u32 %v27, 1073741824
    %v32 = vor.u32 %v28, 1073741824
    %v37 = vsub.f32 %v29, 3.0
    %v38 = vsub.f32 %v30, 3.0
    %v39 = vsub.f32 %v31, 3.0
    %v40 = vsub.f32 %v32, 3.0
    %41 = vst [vmem:[#allocation5] sm:$0xff] %v37
    %42 = vst [vmem:[#allocation5 + $0x8] sm:$0xff] %v38
    %43 = vst [vmem:[#allocation5 + $0x10] sm:$0xff] %v39
    %44 = vst [vmem:[#allocation5 + $0x18] sm:$0xff] %v40
    // Predicated region
    $region10: #{tpu_custom_call.1} parent=1 // pred_check
      _
    $region11: #{tpu_custom_call.1} parent=1 // pred_check_branch
      %46 = sbr.rel (0) target = $region13
    $region12: #{tpu_custom_call.1} parent=1 // pred_region
      %s48 = ssub.s32 512, 512
      %49 = vsyncadd [#allocation4], %s48
      %s51 = sshll.u32 [#allocation5], 4
      %s52 = int_to_ptr.vmem [resolvable:$true] %s51
      %54 = dma.vmem_to_hbm [thread:$0]  %s52, 512, %s1, [#allocation4]
    $region13: #{tpu_custom_call.1} parent=1 // pred_fallthru
      _
    // Predicated region
    $region14: #{tpu_custom_call.1} parent=1 // pred_check
      _
    $region15: #{tpu_custom_call.1} parent=1 // pred_check_branch
      %56 = sbr.rel (0) target = $region17
    $region16: #{tpu_custom_call.1} parent=1 // pred_region
      %57 = dma.done [#allocation4], 512
    $region17: #{tpu_custom_call.1} parent=1 // pred_fallthru
      _
    %58 = vsyncpa [#allocation3], 1
    %59 = vsyncpa [#allocation4], 1

</llo_original>
